<compile_context>
chip_gen: v5e
topology: v5e:2x2
jax: 0.10.0
libtpu: 0.0.40
codegen_flags: <defaults>
</compile_context>

<pallas_src>
import jax
import jax.numpy as jnp
from jax.experimental import pallas as pl
from jax.experimental.pallas import tpu as pltpu

NODE_TILE = 256   # node-axis padding / tile target (128-multiple -> ok on v5e too)
LANE_TILE = 128   # feature-axis padding -> lane-dense stores, full vreg lanes


def _round_up(x, m):
    return ((x + m - 1) // m) * m


def _pick_tile(dim, target):
    t = min(target, dim)
    while dim % t:
        t //= 2
    return t


def _fused_gcn_layer_kernel(a_ref, x_ref, wt_ref, bias_ref, o_ref, acc_ref):
    """One (tm, Fout) row tile of  (A @ X) @ W^T + b.

    Grid axis 0 tiles output rows (parallel), axis 1 tiles the node-reduction
    (arbitrary).  acc_ref holds the f32 partial sum of A @ X for this row tile.
    """
    k = pl.program_id(1)

    @pl.when(k == 0)
    def _():
        acc_ref[...] = jnp.zeros_like(acc_ref)

    # Aggregation partial sum: bf16 operands on the MXU, f32 accumulation.
    acc_ref[...] += jnp.dot(a_ref[...], x_ref[...],
                            preferred_element_type=jnp.float32)

    @pl.when(k == pl.num_programs(1) - 1)
    def _():
        # Epilogue: small feature transform + bias, exactly once per row tile.
        h = jnp.dot(acc_ref[...].astype(jnp.bfloat16), wt_ref[...],
                    preferred_element_type=jnp.float32)
        o_ref[...] = (h + bias_ref[...]).astype(o_ref.dtype)


def gcn_layer(a_bf16, x_bf16, w, b, *, tm_target=NODE_TILE, tk_target=NODE_TILE,
              out_dtype=jnp.float32):
    """Fused GCNConv: (A @ X) @ W^T + b in a single pallas_call.

    a_bf16: [Np, Np] bf16, x_bf16: [Np, Fin_p] bf16 (Fin_p % 128 == 0),
    w: [Fout_p, Fin_p] f32, b: [Fout_p] f32.  Returns f32 [Np, Fout_p].
    Fin_p / Fout_p are kept untiled (they fit in VMEM for this module).
    """
    np_, np2 = a_bf16.shape
    assert np_ == np2
    fin_p = x_bf16.shape[1]
    fout_p = w.shape[0]
    tm = _pick_tile(np_, tm_target)
    tk = _pick_tile(np_, tk_target)
    grid = (np_ // tm, np_ // tk)

    wt = jnp.transpose(w).astype(jnp.bfloat16)        # [Fin_p, Fout_p]
    bias2 = b.reshape(1, fout_p).astype(jnp.float32)  # [1, Fout_p]

    cost = pl.CostEstimate(
        flops=2 * np_ * np_ * fin_p + 2 * np_ * fin_p * fout_p,
        transcendentals=0,
        bytes_accessed=(np_ * np_ * 2            # A (bf16)
                        + np_ * fin_p * 2        # X (bf16)
                        + fin_p * fout_p * 2     # W^T (bf16)
                        + np_ * fout_p * 4       # output (f32)
                        + fout_p * 4),           # bias
    )
    return pl.pallas_call(
        _fused_gcn_layer_kernel,
        out_shape=jax.ShapeDtypeStruct((np_, fout_p), out_dtype),
        grid=grid,
        in_specs=[
            pl.BlockSpec((tm, tk), lambda i, k: (i, k)),         # A row/col tile
            pl.BlockSpec((tk, fin_p), lambda i, k: (k, 0)),      # X K-tile
            pl.BlockSpec((fin_p, fout_p), lambda i, k: (0, 0)),  # W^T (resident)
            pl.BlockSpec((1, fout_p), lambda i, k: (0, 0)),      # bias (resident)
        ],
        out_specs=pl.BlockSpec((tm, fout_p), lambda i, k: (i, 0)),
        scratch_shapes=[pltpu.VMEM((tm, fin_p), jnp.float32)],
        compiler_params=pltpu.CompilerParams(
            dimension_semantics=("parallel", "arbitrary"),
            vmem_limit_bytes=32 * 1024 * 1024,
        ),
        cost_estimate=cost,
    )(a_bf16, x_bf16, wt, bias2)


def build_normalized_adjacency(edge_index, num_nodes):
    """Dense D^{-1/2} (A + I_missing) D^{-1/2}, A[dst, src] = 1 per edge.

    Matches PyG gcn_norm with add_remaining_self_loops: a self-loop is only
    added for nodes that do not already have one.
    """
    src, dst = edge_index[0], edge_index[1]
    a = jnp.zeros((num_nodes, num_nodes), jnp.float32)
    a = a.at[dst, src].add(1.0)
    diag = jnp.diagonal(a)
    a = a + jnp.diag((diag == 0.0).astype(jnp.float32))
    deg = a.sum(axis=1)                                  # in-degree incl. self-loop
    dinv = jnp.where(deg > 0, jax.lax.rsqrt(deg), 0.0)
    return dinv[:, None] * a * dinv[None, :]


# TODO(synk): for real (sparse) graphs, replace the dense NxN A_norm with a
# blocked-CSR layout driven by PrefetchScalarGridSpec (row-ptr/col-idx as
# scalar prefetch) to skip all-zero column tiles.


@jax.jit
def _gcn_forward(w1, b1, w2, b2, x, edge_index):
    n, fin = x.shape
    h_feats = w1.shape[0]

    n_p = _round_up(n, NODE_TILE)
    fin_p = _round_up(fin, LANE_TILE)
    h_p = _round_up(h_feats, LANE_TILE)

    a = build_normalized_adjacency(edge_index, n)
    # Pad once (zero rows/cols are inert) and cast the dominant NxN operand
    # to bf16 once here, not per tile.
    a_p = jnp.pad(a, ((0, n_p - n), (0, n_p - n))).astype(jnp.bfloat16)
    x_p = jnp.pad(x, ((0, n_p - n), (0, fin_p - fin))).astype(jnp.bfloat16)
    w1_p = jnp.pad(w1, ((0, h_p - h_feats), (0, fin_p - fin)))
    b1_p = jnp.pad(b1, (0, h_p - h_feats))
    w2_p = jnp.pad(w2, ((0, h_p - h_feats), (0, h_p - h_feats)))
    b2_p = jnp.pad(b2, (0, h_p - h_feats))

    h1 = gcn_layer(a_p, x_p, w1_p, b1_p)                       # conv1
    h2 = gcn_layer(a_p, h1.astype(jnp.bfloat16), w2_p, b2_p)   # conv2
    return h2[:n, :h_feats]


class GCNPallas:
    """Mirror of the PyTorch `GCN(in_feats, h_feats)` module."""

    def __init__(self, in_feats, h_feats, key):
        k1, k2 = jax.random.split(key)

        # PyG GCNConv: glorot weight [out, in], zero bias.
        def glorot(k, fan_out, fan_in):
            limit = jnp.sqrt(6.0 / (fan_in + fan_out))
            return jax.random.uniform(k, (fan_out, fan_in), jnp.float32,
                                      minval=-limit, maxval=limit)

        self.w1 = glorot(k1, h_feats, in_feats)
        self.b1 = jnp.zeros((h_feats,), jnp.float32)
        self.w2 = glorot(k2, h_feats, h_feats)
        self.b2 = jnp.zeros((h_feats,), jnp.float32)

    def forward(self, x, edge_index):
        # TODO(synk): the PyTorch forward prints model.named_parameters()
        # (a side effect with no compute); omitted here.
        return _gcn_forward(self.w1, self.b1, self.w2, self.b2, x, edge_index)


if __name__ == "__main__":
    key = jax.random.PRNGKey(0)
    k_x, k_e, k_p = jax.random.split(key, 3)

    # Module is GCN(1, 1): in_feats = h_feats = 1.  Node/edge counts chosen so
    # the padded problem exercises a multi-tile (2 x 2) fused grid per layer.
    N, E, IN_FEATS, H_FEATS = 300, 1200, 1, 1

    x = jax.random.normal(k_x, (N, IN_FEATS), jnp.float32)
    edge_index = jax.random.randint(k_e, (2, E), 0, N, jnp.int32)

    model = GCNPallas(IN_FEATS, H_FEATS, k_p)
    out = jax.block_until_ready(model.forward(x, edge_index))
    assert out.shape == (N, H_FEATS)

    # Pure-JAX reference following the same operand rounding / associativity
    # as the fused kernel path: (bf16(A) @ bf16(X)) @ bf16(W^T) + b, f32 accum.
    def ref_layer(a, xin, w, b):
        bf = lambda t: t.astype(jnp.bfloat16)
        ax = jnp.dot(bf(a), bf(xin), preferred_element_type=jnp.float32)
        h = jnp.dot(bf(ax), bf(w.T), preferred_element_type=jnp.float32)
        return h + b

    a_ref = build_normalized_adjacency(edge_index, N)
    h_ref = ref_layer(a_ref, x, model.w1, model.b1)
    h_ref = ref_layer(a_ref, h_ref, model.w2, model.b2)
    err = float(jnp.max(jnp.abs(out - h_ref)))
    assert jnp.allclose(out, h_ref, atol=1e-2, rtol=1e-2), err

    print("KERNEL_OK")
</pallas_src>

<mosaic_0001>
module attributes {stable_mosaic.version = 11 : i64} {
  func.func @_fused_gcn_layer_kernel(%arg0: i32, %arg1: i32, %arg2: memref<256x256xbf16, #tpu.memory_space<vmem>>, %arg3: memref<256x128xbf16, #tpu.memory_space<vmem>>, %arg4: memref<128x128xbf16, #tpu.memory_space<vmem>>, %arg5: memref<1x128xf32, #tpu.memory_space<vmem>>, %arg6: memref<256x128xf32, #tpu.memory_space<vmem>>, %arg7: memref<256x128xf32, #tpu.memory_space<vmem>>) attributes {dimension_semantics = [#tpu.dimension_semantics<parallel>, #tpu.dimension_semantics<arbitrary>], iteration_bounds = array<i64: 2, 2>, scalar_prefetch = 0 : i64, scratch_operands = 1 : i64, tpu.core_type = #tpu.core_type<tc>, window_params = [{transform_indices = @transform_0, window_bounds = array<i64: 256, 256>}, {transform_indices = @transform_1, window_bounds = array<i64: 256, 128>}, {pipeline_mode = #tpu.pipeline_mode<synchronous>, transform_indices = @transform_2, window_bounds = array<i64: 128, 128>}, {pipeline_mode = #tpu.pipeline_mode<synchronous>, transform_indices = @transform_3, window_bounds = array<i64: 1, 128>}, {transform_indices = @transform_4, window_bounds = array<i64: 256, 128>}]} {
    %c0_i32 = arith.constant 0 : i32
    %0 = arith.cmpi eq, %arg1, %c0_i32 : i32
    %1 = arith.extui %0 : i1 to i32
    %c0_i32_0 = arith.constant 0 : i32
    %2 = arith.cmpi ne, %1, %c0_i32_0 : i32
    scf.if %2 {
      %cst_9 = arith.constant 0.000000e+00 : f32
      %12 = vector.broadcast %cst_9 : f32 to vector<256x128xf32>
      %c0_10 = arith.constant 0 : index
      %c0_11 = arith.constant 0 : index
      %13 = vector.load %arg7[%c0_10, %c0_11] : memref<256x128xf32, #tpu.memory_space<vmem>>, vector<256x128xf32>
      tpu.vector_store %arg7[%c0_10, %c0_11], %12 {strides = array<i32>} : memref<256x128xf32, #tpu.memory_space<vmem>>, vector<256x128xf32>,
    } else {
    }
    %c0 = arith.constant 0 : index
    %c0_1 = arith.constant 0 : index
    %3 = vector.load %arg7[%c0, %c0_1] : memref<256x128xf32, #tpu.memory_space<vmem>>, vector<256x128xf32>
    %c0_2 = arith.constant 0 : index
    %c0_3 = arith.constant 0 : index
    %4 = vector.load %arg2[%c0_2, %c0_3] : memref<256x256xbf16, #tpu.memory_space<vmem>>, vector<256x256xbf16>
    %c0_4 = arith.constant 0 : index
    %c0_5 = arith.constant 0 : index
    %5 = vector.load %arg3[%c0_4, %c0_5] : memref<256x128xbf16, #tpu.memory_space<vmem>>, vector<256x128xbf16>
    %cst = arith.constant dense<0.000000e+00> : vector<256x128xf32>
    %6 = tpu.matmul %4, %5, %cst {dimension_numbers = #tpu.dot_dimension_numbers<[1], [0], [0], [1], [0, 0, 1, 1], [], []>} : vector<256x256xbf16>, vector<256x128xbf16>, vector<256x128xf32> -> vector<256x128xf32>
    %7 = arith.addf %3, %6 : vector<256x128xf32>
    %c0_6 = arith.constant 0 : index
    %c0_7 = arith.constant 0 : index
    %8 = vector.load %arg7[%c0_6, %c0_7] : memref<256x128xf32, #tpu.memory_space<vmem>>, vector<256x128xf32>
    tpu.vector_store %arg7[%c0_6, %c0_7], %7 {strides = array<i32>} : memref<256x128xf32, #tpu.memory_space<vmem>>, vector<256x128xf32>,
    %c1_i32 = arith.constant 1 : i32
    %9 = arith.cmpi eq, %arg1, %c1_i32 : i32
    %10 = arith.extui %9 : i1 to i32
    %c0_i32_8 = arith.constant 0 : i32
    %11 = arith.cmpi ne, %10, %c0_i32_8 : i32
    scf.if %11 {
      %c0_9 = arith.constant 0 : index
      %c0_10 = arith.constant 0 : index
      %12 = vector.load %arg7[%c0_9, %c0_10] : memref<256x128xf32, #tpu.memory_space<vmem>>, vector<256x128xf32>
      %13 = arith.truncf %12 : vector<256x128xf32> to vector<256x128xbf16>
      %c0_11 = arith.constant 0 : index
      %c0_12 = arith.constant 0 : index
      %14 = vector.load %arg4[%c0_11, %c0_12] : memref<128x128xbf16, #tpu.memory_space<vmem>>, vector<128x128xbf16>
      %cst_13 = arith.constant dense<0.000000e+00> : vector<256x128xf32>
      %15 = tpu.matmul %13, %14, %cst_13 {dimension_numbers = #tpu.dot_dimension_numbers<[1], [0], [0], [1], [0, 0, 1, 1], [], []>} : vector<256x128xbf16>, vector<128x128xbf16>, vector<256x128xf32> -> vector<256x128xf32>
      %c0_14 = arith.constant 0 : index
      %c0_15 = arith.constant 0 : index
      %16 = vector.load %arg5[%c0_14, %c0_15] : memref<1x128xf32, #tpu.memory_space<vmem>>, vector<1x128xf32>
      %17 = vector.broadcast %16 : vector<1x128xf32> to vector<256x128xf32>
      %18 = arith.addf %15, %17 : vector<256x128xf32>
      %c0_16 = arith.constant 0 : index
      %c0_17 = arith.constant 0 : index
      %19 = vector.load %arg6[%c0_16, %c0_17] : memref<256x128xf32, #tpu.memory_space<vmem>>, vector<256x128xf32>
      tpu.vector_store %arg6[%c0_16, %c0_17], %18 {strides = array<i32>} : memref<256x128xf32, #tpu.memory_space<vmem>>, vector<256x128xf32>,
    } else {
    }
    return
  }
  func.func @transform_0(%arg0: i32, %arg1: i32) -> (i32, i32) {
    %c0_i32 = arith.constant 0 : i32
    return %arg0, %arg1 : i32, i32
  }
  func.func @transform_1(%arg0: i32, %arg1: i32) -> (i32, i32) {
    %c0_i32 = arith.constant 0 : i32
    %c0_i32_0 = arith.constant 0 : i32
    return %arg1, %c0_i32 : i32, i32
  }
  func.func @transform_2(%arg0: i32, %arg1: i32) -> (i32, i32) {
    %c0_i32 = arith.constant 0 : i32
    %c0_i32_0 = arith.constant 0 : i32
    %c0_i32_1 = arith.constant 0 : i32
    return %c0_i32, %c0_i32_0 : i32, i32
  }
  func.func @transform_3(%arg0: i32, %arg1: i32) -> (i32, i32) {
    %c0_i32 = arith.constant 0 : i32
    %c0_i32_0 = arith.constant 0 : i32
    %c0_i32_1 = arith.constant 0 : i32
    return %c0_i32, %c0_i32_0 : i32, i32
  }
  func.func @transform_4(%arg0: i32, %arg1: i32) -> (i32, i32) {
    %c0_i32 = arith.constant 0 : i32
    %c0_i32_0 = arith.constant 0 : i32
    return %arg0, %c0_i32 : i32, i32
  }
}

</mosaic_0001>

<llo_original>
// kernel: _gcn_forward.2
$region0: #{_gcn_forward.2}
  #allocation0 [shape = 'u32[]', space=smem, size = 0x4, offset = 0x4, fixed_abs, tag = 'smem constant byte address 0x4 - core index']
  #allocation1 [shape = 'u32[72,128]{1,0:T(1,128)}', space=vmem, size = 0x9000, scoped, tag = 'internal scratch']
  #allocation2 [shape = 'f32[256,128]{1,0:T(8,128)}', space=vmem, size = 0x20000, scoped, tag = 'scratch operand']
  %s0 = inlined_call_operand.vmem [shape: bf16[512,512], index: 0, kind: input, shape index: {}]
  %s1 = inlined_call_operand.vmem [shape: bf16[512,128], index: 1, kind: input, shape index: {}]
  %s2 = inlined_call_operand.vmem [shape: bf16[128,128], index: 2, kind: input, shape index: {}]
  %s3 = inlined_call_operand.vmem [shape: f32[1,128], index: 3, kind: input, shape index: {}]
  %s4 = inlined_call_operand.vmem [shape: f32[512,128], index: 4, kind: output, shape index: {}]
  %s5 = sld [smem:[#allocation0]]
  $region95: #{_gcn_forward.2} parent=0
    _
  %s7 = ssub.s32 1, %s5
  %s8 = scalar_select 0, %s7, %s5
  $region1: #{_gcn_forward.2} parent=0
    #allocation3 [shape = 'u8[262144]{0}', space=vmem, size = 0x40000, scoped, tag = 'input window, operand 0']
    loop: start=0, step=1, limit=6
    $region2: #{_gcn_forward.2} parent=1 // loop_pre_header
      _
    $region3: #{_gcn_forward.2} parent=1 // loop_header
      %s10 = sphi 0, %s14
      %p11 = scmp.ge.s32.totalorder %s10, 6
      %s17 = sphi 0, %s29
      %s18 = sphi 0, %s25
      %s19 = sphi 0, %s17
      %s20 = sphi 0, %s18
      %s21 = sphi 0, %s19
      %s22 = sphi 0, %s20
      %s34 = sphi 0, %s36
      %s37 = sphi 0, %s34
      %s38 = sphi 0, %s37
      %s54 = sphi 0, %s38
      %s60 = sphi 0, %s62
      %s63 = sphi 0, %s60
      %s64 = sphi 0, %s63
      %s80 = sphi 0, %s64
      %s84 = sphi 0, %s84
      %s86 = sphi 0, %s84
      %s87 = sphi 0, %s86
      %s101 = sphi 0, %s87
      %s105 = sphi 0, %s105
      %s107 = sphi 0, %s105
      %s108 = sphi 0, %s107
      %s122 = sphi 0, %s108
      %s128 = sphi 0, %s130
      %s131 = sphi 0, %s128
      %s132 = sphi 0, %s131
      %s148 = sphi 0, %s132
    $region4: #{_gcn_forward.2} parent=1 // loop_header_branch
      %13 = sbr.rel (%p11) target = $region8
    $region5: #{_gcn_forward.2} parent=1 // loop_body
      %s15 = ssub.s32 %s10, 1
      %s16 = ssub.s32 %s10, 2
      %s23 = sadd.s32 1, %s18
      %p24 = scmp.ge.s32.totalorder %s23, 2
      %s25 = scalar_select %p24, 0, %s23
      %s26 = sadd.s32 1, %s17
      %s27 = scalar_select %p24, %s26, %s17
      %p28 = scmp.ge.s32.totalorder %s27, 2
      %s29 = scalar_select %p28, 0, %s27
      %s30 = ssub.s32 %s17, %s29
      %s31 = ssub.s32 %s18, %s25
      %s32 = sor.u32 %s30, %s31
      %p33 = scmp.eq.s32.totalorder %s32, 0
      %s35 = sadd.s32 %s34, 1
      %s36 = scalar_select %p33, %s34, %s35
      %p39 = pneg %p33
      %p40 = scmp.eq.s32.totalorder %s10, 3
      %p41 = por %p39, %p40
      %p42 = scmp.ne.s32.totalorder %s34, %s37
      %p43 = scmp.eq.s32.totalorder %s10, 0
      %p44 = por %p42, %p43
      %p45 = scmp.ne.s32.totalorder %s34, %s37
      %p46 = scmp.eq.s32.totalorder %s15, 3
      %p47 = por %p45, %p46
      %p48 = scmp.ne.s32.totalorder %s37, %s38
      %p49 = scmp.eq.s32.totalorder %s15, 0
      %p50 = por %p48, %p49
      %p51 = scmp.ne.s32.totalorder %s37, %s38
      %p52 = scmp.eq.s32.totalorder %s16, 3
      %p53 = por %p51, %p52
      %p55 = scmp.ne.s32.totalorder %s38, %s54
      %p56 = scmp.eq.s32.totalorder %s16, 0
      %p57 = por %p55, %p56
      %s58 = ssub.s32 %s18, %s25
      %p59 = scmp.eq.s32.totalorder %s58, 0
      %s61 = sadd.s32 %s60, 1
      %s62 = scalar_select %p59, %s60, %s61
      %p65 = pneg %p59
      %p66 = scmp.eq.s32.totalorder %s10, 3
      %p67 = por %p65, %p66
      %p68 = scmp.ne.s32.totalorder %s60, %s63
      %p69 = scmp.eq.s32.totalorder %s10, 0
      %p70 = por %p68, %p69
      %p71 = scmp.ne.s32.totalorder %s60, %s63
      %p72 = scmp.eq.s32.totalorder %s15, 3
      %p73 = por %p71, %p72
      %p74 = scmp.ne.s32.totalorder %s63, %s64
      %p75 = scmp.eq.s32.totalorder %s15, 0
      %p76 = por %p74, %p75
      %p77 = scmp.ne.s32.totalorder %s63, %s64
      %p78 = scmp.eq.s32.totalorder %s16, 3
      %p79 = por %p77, %p78
      %p81 = scmp.ne.s32.totalorder %s64, %s80
      %p82 = scmp.eq.s32.totalorder %s16, 0
      %p83 = por %p81, %p82
      %s85 = sadd.s32 %s84, 1
      %p88 = scmp.eq.s32.totalorder %s10, 3
      %p89 = scmp.ne.s32.totalorder %s84, %s86
      %p90 = scmp.eq.s32.totalorder %s10, 0
      %p91 = por %p89, %p90
      %p92 = scmp.ne.s32.totalorder %s84, %s86
      %p93 = scmp.eq.s32.totalorder %s15, 3
      %p94 = por %p92, %p93
      %p95 = scmp.ne.s32.totalorder %s86, %s87
      %p96 = scmp.eq.s32.totalorder %s15, 0
      %p97 = por %p95, %p96
      %p98 = scmp.ne.s32.totalorder %s86, %s87
      %p99 = scmp.eq.s32.totalorder %s16, 3
      %p100 = por %p98, %p99
      %p102 = scmp.ne.s32.totalorder %s87, %s101
      %p103 = scmp.eq.s32.totalorder %s16, 0
      %p104 = por %p102, %p103
      %s106 = sadd.s32 %s105, 1
      %p109 = scmp.eq.s32.totalorder %s10, 3
      %p110 = scmp.ne.s32.totalorder %s105, %s107
      %p111 = scmp.eq.s32.totalorder %s10, 0
      %p112 = por %p110, %p111
      %p113 = scmp.ne.s32.totalorder %s105, %s107
      %p114 = scmp.eq.s32.totalorder %s15, 3
      %p115 = por %p113, %p114
      %p116 = scmp.ne.s32.totalorder %s107, %s108
      %p117 = scmp.eq.s32.totalorder %s15, 0
      %p118 = por %p116, %p117
      %p119 = scmp.ne.s32.totalorder %s107, %s108
      %p120 = scmp.eq.s32.totalorder %s16, 3
      %p121 = por %p119, %p120
      %p123 = scmp.ne.s32.totalorder %s108, %s122
      %p124 = scmp.eq.s32.totalorder %s16, 0
      %p125 = por %p123, %p124
      %s126 = ssub.s32 %s17, %s29
      %p127 = scmp.eq.s32.totalorder %s126, 0
      %s129 = sadd.s32 %s128, 1
      %s130 = scalar_select %p127, %s128, %s129
      %p133 = pneg %p127
      %p134 = scmp.eq.s32.totalorder %s10, 3
      %p135 = por %p133, %p134
      %p136 = scmp.ne.s32.totalorder %s128, %s131
      %p137 = scmp.eq.s32.totalorder %s10, 0
      %p138 = por %p136, %p137
      %p139 = scmp.ne.s32.totalorder %s128, %s131
      %p140 = scmp.eq.s32.totalorder %s15, 3
      %p141 = por %p139, %p140
      %p142 = scmp.ne.s32.totalorder %s131, %s132
      %p143 = scmp.eq.s32.totalorder %s15, 0
      %p144 = por %p142, %p143
      %p145 = scmp.ne.s32.totalorder %s131, %s132
      %p146 = scmp.eq.s32.totalorder %s16, 3
      %p147 = por %p145, %p146
      %p149 = scmp.ne.s32.totalorder %s132, %s148
      %p150 = scmp.eq.s32.totalorder %s16, 0
      %p151 = por %p149, %p150
      %p152 = scmp.le.s32.totalorder 1, %s10
      %p153 = scmp.lt.s32.totalorder %s10, 5
      %p154 = pnand %p152, %p153
      %p155 = pneg %p154
      // Predicated region
      $region9: #{_gcn_forward.2} parent=5 // pred_check
        _
      $region10: #{_gcn_forward.2} parent=5 // pred_check_branch
        %157 = sbr.rel (%p154) target = $region12
      $region11: #{_gcn_forward.2} parent=5 // pred_region
        %s158 = ssub.s32 %s10, 1
        // Predicated region
        $region13: #{_gcn_forward.2} parent=11 // pred_check
          %p159 = pneg %p97
        $region14: #{_gcn_forward.2} parent=11 // pred_check_branch
          %161 = sbr.rel (%p159) target = $region16
        $region15: #{_gcn_forward.2} parent=11 // pred_region
          _
        $region16: #{_gcn_forward.2} parent=11 // pred_fallthru
          _
        // Predicated region
        $region17: #{_gcn_forward.2} parent=11 // pred_check
          %p162 = pneg %p118
        $region18: #{_gcn_forward.2} parent=11 // pred_check_branch
          %164 = sbr.rel (%p162) target = $region20
        $region19: #{_gcn_forward.2} parent=11 // pred_region
          _
        $region20: #{_gcn_forward.2} parent=11 // pred_fallthru
          _
      $region12: #{_gcn_forward.2} parent=5 // pred_fallthru
        _
      %p165 = scmp.lt.s32.totalorder %s10, 4
      // Predicated region
      $region21: #{_gcn_forward.2} parent=5 // pred_check
        %p166 = pneg %p165
      $region22: #{_gcn_forward.2} parent=5 // pred_check_branch
        %168 = sbr.rel (%p166) target = $region24
      $region23: #{_gcn_forward.2} parent=5 // pred_region
        // Predicated region
        $region25: #{_gcn_forward.2} parent=23 // pred_check
          %p169 = pneg %p44
        $region26: #{_gcn_forward.2} parent=23 // pred_check_branch
          %171 = sbr.rel (%p169) target = $region28
        $region27: #{_gcn_forward.2} parent=23 // pred_region
          %s172 = sand.u32 %s34, 1
          %s173 = sand.u32 %s34, 1
          %s174 = smul.addr %s173, 256
          %s175 = scalar_lea.vmem [#allocation3], %s174
          %s176 = smul.u32 32, %s17
          %s177 = smul.u32 2, %s18
          %s178 = smul.addr %s176, 4
          %s179 = sadd.s32 %s177, %s178
          %s180 = smul.addr %s179, 4
          %s181 = scalar_lea.vmem %s0, %s180
          // Predicated region
          $region29: #{_gcn_forward.2} parent=27 // pred_check
            _
          $region30: #{_gcn_forward.2} parent=27 // pred_check_branch
            %183 = sbr.rel (0) target = $region32
          $region31: #{_gcn_forward.2} parent=27 // pred_region
            // Predicated region
            $region33: #{_gcn_forward.2} parent=31 // pred_check
              _
            $region34: #{_gcn_forward.2} parent=31 // pred_check_branch
              %185 = sbr.rel (0) target = $region36
            $region35: #{_gcn_forward.2} parent=31 // pred_region
              // Predicated region
              $region48: #{_gcn_forward.2} parent=35 // pred_check
                _
              $region49: #{_gcn_forward.2} parent=35 // pred_check_branch
                %263 = sbr.rel (0) target = $region51
              $region50: #{_gcn_forward.2} parent=35 // pred_region
                loop: start=0, step=1, limit=1
                $region52: #{_gcn_forward.2} parent=50 // loop_pre_header
                  _
                $region53: #{_gcn_forward.2} parent=50 // loop_header
                  %s265 = sphi 0, %s269
                  %p266 = scmp.ge.s32.totalorder %s265, 1
                  %s270 = sphi %s181, %s181
                  %s271 = sphi %s175, %s175
                $region54: #{_gcn_forward.2} parent=50 // loop_header_branch
                  %268 = sbr.rel (%p266) target = $region58
                $region55: #{_gcn_forward.2} parent=50 // loop_body
                  %v272 = vld [vmem:[%s270] sm:$0xff]
                  %273 = vst [vmem:[%s271] sm:$0xff] %v272
                  %v274 = vld [vmem:[%s270 + $0x10] sm:$0xff]
                  %275 = vst [vmem:[%s271 + $0x8] sm:$0xff] %v274
                  %v276 = vld [vmem:[%s270 + $0x20] sm:$0xff]
                  %277 = vst [vmem:[%s271 + $0x10] sm:$0xff] %v276
                  %v278 = vld [vmem:[%s270 + $0x30] sm:$0xff]
                  %279 = vst [vmem:[%s271 + $0x18] sm:$0xff] %v278
                  %v280 = vld [vmem:[%s270 + $0x40] sm:$0xff]
                  %281 = vst [vmem:[%s271 + $0x20] sm:$0xff] %v280
                  %v282 = vld [vmem:[%s270 + $0x50] sm:$0xff]
                  %283 = vst [vmem:[%s271 + $0x28] sm:$0xff] %v282
                  %v284 = vld [vmem:[%s270 + $0x60] sm:$0xff]
                  %285 = vst [vmem:[%s271 + $0x30] sm:$0xff] %v284
                  %v286 = vld [vmem:[%s270 + $0x70] sm:$0xff]
                  %287 = vst [vmem:[%s271 + $0x38] sm:$0xff] %v286
                  %v288 = vld [vmem:[%s270 + $0x80] sm:$0xff]
                  %289 = vst [vmem:[%s271 + $0x40] sm:$0xff] %v288
                  %v290 = vld [vmem:[%s270 + $0x90] sm:$0xff]
                  %291 = vst [vmem:[%s271 + $0x48] sm:$0xff] %v290
                  %v292 = vld [vmem:[%s270 + $0xa0] sm:$0xff]
                  %293 = vst [vmem:[%s271 + $0x50] sm:$0xff] %v292
                  %v294 = vld [vmem:[%s270 + $0xb0] sm:$0xff]
                  %295 = vst [vmem:[%s271 + $0x58] sm:$0xff] %v294
                  %v296 = vld [vmem:[%s270 + $0xc0] sm:$0xff]
                  %297 = vst [vmem:[%s271 + $0x60] sm:$0xff] %v296
                  %v298 = vld [vmem:[%s270 + $0xd0] sm:$0xff]
                  %299 = vst [vmem:[%s271 + $0x68] sm:$0xff] %v298
                  %v300 = vld [vmem:[%s270 + $0xe0] sm:$0xff]
                  %301 = vst [vmem:[%s271 + $0x70] sm:$0xff] %v300
                  %v302 = vld [vmem:[%s270 + $0xf0] sm:$0xff]
                  %303 = vst [vmem:[%s271 + $0x78] sm:$0xff] %v302
                  %v304 = vld [vmem:[%s270 + $0x100] sm:$0xff]
                  %305 = vst [vmem:[%s271 + $0x80] sm:$0xff] %v304
                  %v306 = vld [vmem:[%s270 + $0x110] sm:$0xff]
                  %307 = vst [vmem:[%s271 + $0x88] sm:$0xff] %v306
                  %v308 = vld [vmem:[%s270 + $0x120] sm:$0xff]
                  %309 = vst [vmem:[%s271 + $0x90] sm:$0xff] %v308
                  %v310 = vld [vmem:[%s270 + $0x130] sm:$0xff]
                  %311 = vst [vmem:[%s271 + $0x98] sm:$0xff] %v310
                  %v312 = vld [vmem:[%s270 + $0x140] sm:$0xff]
                  %313 = vst [vmem:[%s271 + $0xa0] sm:$0xff] %v312
                  %v314 = vld [vmem:[%s270 + $0x150] sm:$0xff]
                  %315 = vst [vmem:[%s271 + $0xa8] sm:$0xff] %v314
                  %v316 = vld [vmem:[%s270 + $0x160] sm:$0xff]
                  %317 = vst [vmem:[%s271 + $0xb0] sm:$0xff] %v316
                  %v318 = vld [vmem:[%s270 + $0x170] sm:$0xff]
                  %319 = vst [vmem:[%s271 + $0xb8] sm:$0xff] %v318
                  %v320 = vld [vmem:[%s270 + $0x180] sm:$0xff]
                  %321 = vst [vmem:[%s271 + $0xc0] sm:$0xff] %v320
                  %v322 = vld [vmem:[%s270 + $0x190] sm:$0xff]
                  %323 = vst [vmem:[%s271 + $0xc8] sm:$0xff] %v322
                  %v324 = vld [vmem:[%s270 + $0x1a0] sm:$0xff]
                  %325 = vst [vmem:[%s271 + $0xd0] sm:$0xff] %v324
                  %v326 = vld [vmem:[%s270 + $0x1b0] sm:$0xff]
                  %327 = vst [vmem:[%s271 + $0xd8] sm:$0xff] %v326
                  %v328 = vld [vmem:[%s270 + $0x1c0] sm:$0xff]
                  %329 = vst [vmem:[%s271 + $0xe0] sm:$0xff] %v328
                  %v330 = vld [vmem:[%s270 + $0x1d0] sm:$0xff]
                  %331 = vst [vmem:[%s271 + $0xe8] sm:$0xff] %v330
                  %v332 = vld [vmem:[%s270 + $0x1e0] sm:$0xff]
                  %333 = vst [vmem:[%s271 + $0xf0] sm:$0xff] %v332
                  %v334 = vld [vmem:[%s270 + $0x1f0] sm:$0xff]
                  %335 = vst [vmem:[%s271 + $0xf8] sm:$0xff] %v334
                $region56: #{_gcn_forward.2} parent=50 // loop_footer
                  %s269 = sadd.s32 1, %s265
                $region57: #{_gcn_forward.2} parent=50 // loop_footer_branch
                  %264 = sbr.rel target = $region53
                $region58: #{_gcn_forward.2} parent=50 // loop_exit
                  _
              $region51: #{_gcn_forward.2} parent=35 // pred_fallthru
                _
              // Predicated region
              $region59: #{_gcn_forward.2} parent=35 // pred_check
                _
              $region60: #{_gcn_forward.2} parent=35 // pred_check_branch
                %337 = sbr.rel target = $region62
              $region61: #{_gcn_forward.2} parent=35 // pred_region
                _
              $region62: #{_gcn_forward.2} parent=35 // pred_fallthru
                _
            $region36: #{_gcn_forward.2} parent=31 // pred_fallthru
              _
            // Predicated region
            $region37: #{_gcn_forward.2} parent=31 // pred_check
              _
            $region38: #{_gcn_forward.2} parent=31 // pred_check_branch
              %187 = sbr.rel target = $region40
            $region39: #{_gcn_forward.2} parent=31 // pred_region
              %s189 = ssub.s32 256, 1
              loop: start=0, step=1, limit=1
              $region41: #{_gcn_forward.2} parent=39 // loop_pre_header
                _
              $region42: #{_gcn_forward.2} parent=39 // loop_header
                %s191 = sphi 0, %s195
                %p192 = scmp.ge.s32.totalorder %s191, 1
                %s196 = sphi %s181, %s181
                %s197 = sphi %s175, %s175
              $region43: #{_gcn_forward.2} parent=39 // loop_header_branch
                %194 = sbr.rel (%p192) target = $region47
              $region44: #{_gcn_forward.2} parent=39 // loop_body
                %v198 = vld [vmem:[%s196] sm:%s189]
                %199 = vst [vmem:[%s197] sm:%s189] %v198
                %v200 = vld [vmem:[%s196 + $0x10] sm:%s189]
                %201 = vst [vmem:[%s197 + $0x8] sm:%s189] %v200
                %v202 = vld [vmem:[%s196 + $0x20] sm:%s189]
                %203 = vst [vmem:[%s197 + $0x10] sm:%s189] %v202
                %v204 = vld [vmem:[%s196 + $0x30] sm:%s189]
                %205 = vst [vmem:[%s197 + $0x18] sm:%s189] %v204
                %v206 = vld [vmem:[%s196 + $0x40] sm:%s189]
                %207 = vst [vmem:[%s197 + $0x20] sm:%s189] %v206
                %v208 = vld [vmem:[%s196 + $0x50] sm:%s189]
                %209 = vst [vmem:[%s197 + $0x28] sm:%s189] %v208
                %v210 = vld [vmem:[%s196 + $0x60] sm:%s189]
                %211 = vst [vmem:[%s197 + $0x30] sm:%s189] %v210
                %v212 = vld [vmem:[%s196 + $0x70] sm:%s189]
                %213 = vst [vmem:[%s197 + $0x38] sm:%s189] %v212
                %v214 = vld [vmem:[%s196 + $0x80] sm:%s189]
                %215 = vst [vmem:[%s197 + $0x40] sm:%s189] %v214
                %v216 = vld [vmem:[%s196 + $0x90] sm:%s189]
                %217 = vst [vmem:[%s197 + $0x48] sm:%s189] %v216
                %v218 = vld [vmem:[%s196 + $0xa0] sm:%s189]
                %219 = vst [vmem:[%s197 + $0x50] sm:%s189] %v218
                %v220 = vld [vmem:[%s196 + $0xb0] sm:%s189]
                %221 = vst [vmem:[%s197 + $0x58] sm:%s189] %v220
                %v222 = vld [vmem:[%s196 + $0xc0] sm:%s189]
                %223 = vst [vmem:[%s197 + $0x60] sm:%s189] %v222
                %v224 = vld [vmem:[%s196 + $0xd0] sm:%s189]
                %225 = vst [vmem:[%s197 + $0x68] sm:%s189] %v224
                %v226 = vld [vmem:[%s196 + $0xe0] sm:%s189]
                %227 = vst [vmem:[%s197 + $0x70] sm:%s189] %v226
                %v228 = vld [vmem:[%s196 + $0xf0] sm:%s189]
                %229 = vst [vmem:[%s197 + $0x78] sm:%s189] %v228
                %v230 = vld [vmem:[%s196 + $0x100] sm:%s189]
                %231 = vst [vmem:[%s197 + $0x80] sm:%s189] %v230
                %v232 = vld [vmem:[%s196 + $0x110] sm:%s189]
                %233 = vst [vmem:[%s197 + $0x88] sm:%s189] %v232
                %v234 = vld [vmem:[%s196 + $0x120] sm:%s189]
                %235 = vst [vmem:[%s197 + $0x90] sm:%s189] %v234
                %v236 = vld [vmem:[%s196 + $0x130] sm:%s189]
                %237 = vst [vmem:[%s197 + $0x98] sm:%s189] %v236
                %v238 = vld [vmem:[%s196 + $0x140] sm:%s189]
                %239 = vst [vmem:[%s197 + $0xa0] sm:%s189] %v238
                %v240 = vld [vmem:[%s196 + $0x150] sm:%s189]
                %241 = vst [vmem:[%s197 + $0xa8] sm:%s189] %v240
                %v242 = vld [vmem:[%s196 + $0x160] sm:%s189]
                %243 = vst [vmem:[%s197 + $0xb0] sm:%s189] %v242
                %v244 = vld [vmem:[%s196 + $0x170] sm:%s189]
                %245 = vst [vmem:[%s197 + $0xb8] sm:%s189] %v244
                %v246 = vld [vmem:[%s196 + $0x180] sm:%s189]
                %247 = vst [vmem:[%s197 + $0xc0] sm:%s189] %v246
                %v248 = vld [vmem:[%s196 + $0x190] sm:%s189]
                %249 = vst [vmem:[%s197 + $0xc8] sm:%s189] %v248
                %v250 = vld [vmem:[%s196 + $0x1a0] sm:%s189]
                %251 = vst [vmem:[%s197 + $0xd0] sm:%s189] %v250
                %v252 = vld [vmem:[%s196 + $0x1b0] sm:%s189]
                %253 = vst [vmem:[%s197 + $0xd8] sm:%s189] %v252
                %v254 = vld [vmem:[%s196 + $0x1c0] sm:%s189]
                %255 = vst [vmem:[%s197 + $0xe0] sm:%s189] %v254
                %v256 = vld [vmem:[%s196 + $0x1d0] sm:%s189]
                %257 = vst [vmem:[%s197 + $0xe8] sm:%s189] %v256
                %v258 = vld [vmem:[%s196 + $0x1e0] sm:%s189]
                %259 = vst [vmem:[%s197 + $0xf0] sm:%s189] %v258
                %v260 = vld [vmem:[%s196 + $0x1f0] sm:%s189]
                %261 = vst [vmem:[%s197 + $0xf8] sm:%s189] %v260
              $region45: #{_gcn_forward.2} parent=39 // loop_footer
                %s195 = sadd.s32 1, %s191
              $region46: #{_gcn_forward.2} parent=39 // loop_footer_branch
                %190 = sbr.rel target = $region42
              $region47: #{_gcn_forward.2} parent=39 // loop_exit
                _
            $region40: #{_gcn_forward.2} parent=31 // pred_fallthru
              _
          $region32: #{_gcn_forward.2} parent=27 // pred_fallthru
            _
          %338 = vnop
        $region28: #{_gcn_forward.2} parent=23 // pred_fallthru
          _
        // Predicated region
        $region63: #{_gcn_forward.2} parent=23 // pred_check
          %p339 = pneg %p70
        $region64: #{_gcn_forward.2} parent=23 // pred_check_branch
          %341 = sbr.rel (%p339) target = $region66
        $region65: #{_gcn_forward.2} parent=23 // pred_region
          %s342 = smul.u32 32, %s18
          %p343 = scmp.lt.s32.totalorder %s342, 63
          %s344 = scalar_select %p343, %s342, 63
          %s345 = smul.addr %s344, 4
          %s346 = scalar_lea.vmem %s1, %s345
          %s347 = smul.u32 32, %s18
        $region66: #{_gcn_forward.2} parent=23 // pred_fallthru
          _
      $region24: #{_gcn_forward.2} parent=5 // pred_fallthru
        _
      %p348 = scmp.le.s32.totalorder 1, %s10
      %p349 = scmp.lt.s32.totalorder %s10, 5
      %p350 = pnand %p348, %p349
      %p351 = pneg %p350
      // Predicated region
      $region67: #{_gcn_forward.2} parent=5 // pred_check
        _
      $region68: #{_gcn_forward.2} parent=5 // pred_check_branch
        %353 = sbr.rel (%p350) target = $region70
      $region69: #{_gcn_forward.2} parent=5 // pred_region
        %s354 = ssub.s32 %s10, 1
        %s355 = sand.u32 %s37, 1
        %s356 = sand.u32 %s37, 1
        %s357 = smul.addr %s356, 256
        %s358 = scalar_lea.vmem [#allocation3], %s357
        // Predicated region
        $region71: #{_gcn_forward.2} parent=69 // pred_check
          %p359 = pneg %p50
        $region72: #{_gcn_forward.2} parent=69 // pred_check_branch
          %361 = sbr.rel (%p359) target = $region74
        $region73: #{_gcn_forward.2} parent=69 // pred_region
          _
        $region74: #{_gcn_forward.2} parent=69 // pred_fallthru
          _
        %s362 = sand.u32 %s37, 1
        %s363 = sand.u32 %s37, 1
        %s364 = smul.addr %s363, 256
        %s365 = scalar_lea.vmem [#allocation3], %s364
        %p366 = pneg %p50
        %p367 = pneg %p47
        %s368 = smul.u32 32, %s20
        %p369 = scmp.lt.s32.totalorder %s368, 63
        %s370 = scalar_select %p369, %s368, 63
        %s371 = smul.addr %s370, 4
        %s372 = scalar_lea.vmem %s1, %s371
        %p373 = pneg %p76
        %p374 = pneg %p73
        %p375 = pneg %p97
        %p376 = pneg %p94
        %p377 = pneg %p118
        %p378 = pneg %p115
        %p379 = pneg %p144
        %p380 = pneg %p141
        %s381 = smul.u32 32, %s19
        %p382 = scmp.lt.s32.totalorder %s381, 63
        %s383 = scalar_select %p382, %s381, 63
        %s384 = smul.addr %s383, 8
        %s385 = scalar_lea.vmem %s4, %s384
        %s386 = smul.u32 32, %s19
        %s387 = smul.u32 2, %s20
        %s388 = smul.u32 32, %s20
        %p389 = scmp.lt.s32.totalorder %s388, 63
        %s390 = scalar_select %p389, %s388, 63
        %s391 = smul.addr %s390, 4
        %s392 = scalar_lea.vmem %s1, %s391
        %s393 = smul.u32 32, %s20
        %s394 = smul.u32 32, %s19
        %p395 = scmp.lt.s32.totalorder %s394, 63
        %s396 = scalar_select %p395, %s394, 63
        %s397 = smul.addr %s396, 8
        %s398 = scalar_lea.vmem %s4, %s397
        %s399 = smul.u32 32, %s19
        %p400 = scmp.eq.s32.totalorder %s20, 0
        // Predicated region
        $region75: #{_gcn_forward.2} parent=69 // pred_check
          %p401 = pneg %p400
        $region76: #{_gcn_forward.2} parent=69 // pred_check_branch
          %403 = sbr.rel (%p401) target = $region78
        $region77: #{_gcn_forward.2} parent=69 // pred_region
          %404 = vst [vmem:[#allocation2] sm:$0xff] 0.0
          %405 = vst [vmem:[#allocation2 + $0x8] sm:$0xff] 0.0
          %406 = vst [vmem:[#allocation2 + $0x10] sm:$0xff] 0.0
          %407 = vst [vmem:[#allocation2 + $0x18] sm:$0xff] 0.0
          %408 = vst [vmem:[#allocation2 + $0x20] sm:$0xff] 0.0
          %409 = vst [vmem:[#allocation2 + $0x28] sm:$0xff] 0.0
          %410 = vst [vmem:[#allocation2 + $0x30] sm:$0xff] 0.0
          %411 = vst [vmem:[#allocation2 + $0x38] sm:$0xff] 0.0
          %412 = vst [vmem:[#allocation2 + $0x40] sm:$0xff] 0.0
          %413 = vst [vmem:[#allocation2 + $0x48] sm:$0xff] 0.0
          %414 = vst [vmem:[#allocation2 + $0x50] sm:$0xff] 0.0
          %415 = vst [vmem:[#allocation2 + $0x58] sm:$0xff] 0.0
          %416 = vst [vmem:[#allocation2 + $0x60] sm:$0xff] 0.0
          %417 = vst [vmem:[#allocation2 + $0x68] sm:$0xff] 0.0
          %418 = vst [vmem:[#allocation2 + $0x70] sm:$0xff] 0.0
          %419 = vst [vmem:[#allocation2 + $0x78] sm:$0xff] 0.0
          %420 = vst [vmem:[#allocation2 + $0x80] sm:$0xff] 0.0
          %421 = vst [vmem:[#allocation2 + $0x88] sm:$0xff] 0.0
          %422 = vst [vmem:[#allocation2 + $0x90] sm:$0xff] 0.0
          %423 = vst [vmem:[#allocation2 + $0x98] sm:$0xff] 0.0
          %424 = vst [vmem:[#allocation2 + $0xa0] sm:$0xff] 0.0
          %425 = vst [vmem:[#allocation2 + $0xa8] sm:$0xff] 0.0
          %426 = vst [vmem:[#allocation2 + $0xb0] sm:$0xff] 0.0
          %427 = vst [vmem:[#allocation2 + $0xb8] sm:$0xff] 0.0
          %428 = vst [vmem:[#allocation2 + $0xc0] sm:$0xff] 0.0
          %429 = vst [vmem:[#allocation2 + $0xc8] sm:$0xff] 0.0
          %430 = vst [vmem:[#allocation2 + $0xd0] sm:$0xff] 0.0
          %431 = vst [vmem:[#allocation2 + $0xd8] sm:$0xff] 0.0
          %432 = vst [vmem:[#allocation2 + $0xe0] sm:$0xff] 0.0
          %433 = vst [vmem:[#allocation2 + $0xe8] sm:$0xff] 0.0
          %434 = vst [vmem:[#allocation2 + $0xf0] sm:$0xff] 0.0
          %435 = vst [vmem:[#allocation2 + $0xf8] sm:$0xff] 0.0
        $region78: #{_gcn_forward.2} parent=69 // pred_fallthru
          _
        %v436 = vld [vmem:[#allocation2] sm:$0xff]
        %v437 = vld [vmem:[#allocation2 + $0x8] sm:$0xff]
        %v438 = vld [vmem:[#allocation2 + $0x10] sm:$0xff]
        %v439 = vld [vmem:[#allocation2 + $0x18] sm:$0xff]
        %v440 = vld [vmem:[#allocation2 + $0x20] sm:$0xff]
        %v441 = vld [vmem:[#allocation2 + $0x28] sm:$0xff]
        %v442 = vld [vmem:[#allocation2 + $0x30] sm:$0xff]
        %v443 = vld [vmem:[#allocation2 + $0x38] sm:$0xff]
        %v444 = vld [vmem:[#allocation2 + $0x40] sm:$0xff]
        %v445 = vld [vmem:[#allocation2 + $0x48] sm:$0xff]
        %v446 = vld [vmem:[#allocation2 + $0x50] sm:$0xff]
        %v447 = vld [vmem:[#allocation2 + $0x58] sm:$0xff]
        %v448 = vld [vmem:[#allocation2 + $0x60] sm:$0xff]
        %v449 = vld [vmem:[#allocation2 + $0x68] sm:$0xff]
        %v450 = vld [vmem:[#allocation2 + $0x70] sm:$0xff]
        %v451 = vld [vmem:[#allocation2 + $0x78] sm:$0xff]
        %v452 = vld [vmem:[#allocation2 + $0x80] sm:$0xff]
        %v453 = vld [vmem:[#allocation2 + $0x88] sm:$0xff]
        %v454 = vld [vmem:[#allocation2 + $0x90] sm:$0xff]
        %v455 = vld [vmem:[#allocation2 + $0x98] sm:$0xff]
        %v456 = vld [vmem:[#allocation2 + $0xa0] sm:$0xff]
        %v457 = vld [vmem:[#allocation2 + $0xa8] sm:$0xff]
        %v458 = vld [vmem:[#allocation2 + $0xb0] sm:$0xff]
        %v459 = vld [vmem:[#allocation2 + $0xb8] sm:$0xff]
        %v460 = vld [vmem:[#allocation2 + $0xc0] sm:$0xff]
        %v461 = vld [vmem:[#allocation2 + $0xc8] sm:$0xff]
        %v462 = vld [vmem:[#allocation2 + $0xd0] sm:$0xff]
        %v463 = vld [vmem:[#allocation2 + $0xd8] sm:$0xff]
        %v464 = vld [vmem:[#allocation2 + $0xe0] sm:$0xff]
        %v465 = vld [vmem:[#allocation2 + $0xe8] sm:$0xff]
        %v466 = vld [vmem:[#allocation2 + $0xf0] sm:$0xff]
        %v467 = vld [vmem:[#allocation2 + $0xf8] sm:$0xff]
        %v468 = vld [vmem:[%s358] sm:$0xff]
        %v469 = vld [vmem:[%s358 + $0x8] sm:$0xff]
        %v470 = vld [vmem:[%s358 + $0x10] sm:$0xff]
        %v471 = vld [vmem:[%s358 + $0x18] sm:$0xff]
        %v472 = vld [vmem:[%s358 + $0x20] sm:$0xff]
        %v473 = vld [vmem:[%s358 + $0x28] sm:$0xff]
        %v474 = vld [vmem:[%s358 + $0x30] sm:$0xff]
        %v475 = vld [vmem:[%s358 + $0x38] sm:$0xff]
        %v476 = vld [vmem:[%s358 + $0x40] sm:$0xff]
        %v477 = vld [vmem:[%s358 + $0x48] sm:$0xff]
        %v478 = vld [vmem:[%s358 + $0x50] sm:$0xff]
        %v479 = vld [vmem:[%s358 + $0x58] sm:$0xff]
        %v480 = vld [vmem:[%s358 + $0x60] sm:$0xff]
        %v481 = vld [vmem:[%s358 + $0x68] sm:$0xff]
        %v482 = vld [vmem:[%s358 + $0x70] sm:$0xff]
        %v483 = vld [vmem:[%s358 + $0x78] sm:$0xff]
        %v484 = vld [vmem:[%s358 + $0x80] sm:$0xff]
        %v485 = vld [vmem:[%s358 + $0x88] sm:$0xff]
        %v486 = vld [vmem:[%s358 + $0x90] sm:$0xff]
        %v487 = vld [vmem:[%s358 + $0x98] sm:$0xff]
        %v488 = vld [vmem:[%s358 + $0xa0] sm:$0xff]
        %v489 = vld [vmem:[%s358 + $0xa8] sm:$0xff]
        %v490 = vld [vmem:[%s358 + $0xb0] sm:$0xff]
        %v491 = vld [vmem:[%s358 + $0xb8] sm:$0xff]
        %v492 = vld [vmem:[%s358 + $0xc0] sm:$0xff]
        %v493 = vld [vmem:[%s358 + $0xc8] sm:$0xff]
        %v494 = vld [vmem:[%s358 + $0xd0] sm:$0xff]
        %v495 = vld [vmem:[%s358 + $0xd8] sm:$0xff]
        %v496 = vld [vmem:[%s358 + $0xe0] sm:$0xff]
        %v497 = vld [vmem:[%s358 + $0xe8] sm:$0xff]
        %v498 = vld [vmem:[%s358 + $0xf0] sm:$0xff]
        %v499 = vld [vmem:[%s358 + $0xf8] sm:$0xff]
        %v500 = vld [vmem:[%s392] sm:$0xf]
        %v501 = vld [vmem:[%s392 + $0x4] sm:$0xf]
        %v502 = vld [vmem:[%s392 + $0x8] sm:$0xf]
        %v503 = vld [vmem:[%s392 + $0xc] sm:$0xf]
        %v504 = vld [vmem:[%s392 + $0x10] sm:$0xf]
        %v505 = vld [vmem:[%s392 + $0x14] sm:$0xf]
        %v506 = vld [vmem:[%s392 + $0x18] sm:$0xf]
        %v507 = vld [vmem:[%s392 + $0x1c] sm:$0xf]
        %v508 = vld [vmem:[%s392 + $0x20] sm:$0xf]
        %v509 = vld [vmem:[%s392 + $0x24] sm:$0xf]
        %v510 = vld [vmem:[%s392 + $0x28] sm:$0xf]
        %v511 = vld [vmem:[%s392 + $0x2c] sm:$0xf]
        %v512 = vld [vmem:[%s392 + $0x30] sm:$0xf]
        %v513 = vld [vmem:[%s392 + $0x34] sm:$0xf]
        %v514 = vld [vmem:[%s392 + $0x38] sm:$0xf]
        %v515 = vld [vmem:[%s392 + $0x3c] sm:$0xf]
        %v516 = vld [vmem:[%s392 + $0x40] sm:$0xf]
        %v517 = vld [vmem:[%s392 + $0x44] sm:$0xf]
        %v518 = vld [vmem:[%s392 + $0x48] sm:$0xf]
        %v519 = vld [vmem:[%s392 + $0x4c] sm:$0xf]
        %v520 = vld [vmem:[%s392 + $0x50] sm:$0xf]
        %v521 = vld [vmem:[%s392 + $0x54] sm:$0xf]
        %v522 = vld [vmem:[%s392 + $0x58] sm:$0xf]
        %v523 = vld [vmem:[%s392 + $0x5c] sm:$0xf]
        %v524 = vld [vmem:[%s392 + $0x60] sm:$0xf]
        %v525 = vld [vmem:[%s392 + $0x64] sm:$0xf]
        %v526 = vld [vmem:[%s392 + $0x68] sm:$0xf]
        %v527 = vld [vmem:[%s392 + $0x6c] sm:$0xf]
        %v528 = vld [vmem:[%s392 + $0x70] sm:$0xf]
        %v529 = vld [vmem:[%s392 + $0x74] sm:$0xf]
        %v530 = vld [vmem:[%s392 + $0x78] sm:$0xf]
        %v531 = vld [vmem:[%s392 + $0x7c] sm:$0xf]
        %v564 = vunpack.c.l.b16 %v468
        %v565 = vunpack.c.h.b16 %v468
        %v566 = vunpack.c.l.b16 %v469
        %v567 = vunpack.c.h.b16 %v469
        %v568 = vunpack.c.l.b16 %v470
        %v569 = vunpack.c.h.b16 %v470
        %v570 = vunpack.c.l.b16 %v471
        %v571 = vunpack.c.h.b16 %v471
        %v572 = vunpack.c.l.b16 %v472
        %v573 = vunpack.c.h.b16 %v472
        %v574 = vunpack.c.l.b16 %v473
        %v575 = vunpack.c.h.b16 %v473
        %v576 = vunpack.c.l.b16 %v474
        %v577 = vunpack.c.h.b16 %v474
        %v578 = vunpack.c.l.b16 %v475
        %v579 = vunpack.c.h.b16 %v475
        %v580 = vunpack.c.l.b16 %v476
        %v581 = vunpack.c.h.b16 %v476
        %v582 = vunpack.c.l.b16 %v477
        %v583 = vunpack.c.h.b16 %v477
        %v584 = vunpack.c.l.b16 %v478
        %v585 = vunpack.c.h.b16 %v478
        %v586 = vunpack.c.l.b16 %v479
        %v587 = vunpack.c.h.b16 %v479
        %v588 = vunpack.c.l.b16 %v480
        %v589 = vunpack.c.h.b16 %v480
        %v590 = vunpack.c.l.b16 %v481
        %v591 = vunpack.c.h.b16 %v481
        %v592 = vunpack.c.l.b16 %v482
        %v593 = vunpack.c.h.b16 %v482
        %v594 = vunpack.c.l.b16 %v483
        %v595 = vunpack.c.h.b16 %v483
        %v596 = vunpack.c.l.b16 %v484
        %v597 = vunpack.c.h.b16 %v484
        %v598 = vunpack.c.l.b16 %v485
        %v599 = vunpack.c.h.b16 %v485
        %v600 = vunpack.c.l.b16 %v486
        %v601 = vunpack.c.h.b16 %v486
        %v602 = vunpack.c.l.b16 %v487
        %v603 = vunpack.c.h.b16 %v487
        %v604 = vunpack.c.l.b16 %v488
        %v605 = vunpack.c.h.b16 %v488
        %v606 = vunpack.c.l.b16 %v489
        %v607 = vunpack.c.h.b16 %v489
        %v608 = vunpack.c.l.b16 %v490
        %v609 = vunpack.c.h.b16 %v490
        %v610 = vunpack.c.l.b16 %v491
        %v611 = vunpack.c.h.b16 %v491
        %v612 = vunpack.c.l.b16 %v492
        %v613 = vunpack.c.h.b16 %v492
        %v614 = vunpack.c.l.b16 %v493
        %v615 = vunpack.c.h.b16 %v493
        %v616 = vunpack.c.l.b16 %v494
        %v617 = vunpack.c.h.b16 %v494
        %v618 = vunpack.c.l.b16 %v495
        %v619 = vunpack.c.h.b16 %v495
        %v620 = vunpack.c.l.b16 %v496
        %v621 = vunpack.c.h.b16 %v496
        %v622 = vunpack.c.l.b16 %v497
        %v623 = vunpack.c.h.b16 %v497
        %v624 = vunpack.c.l.b16 %v498
        %v625 = vunpack.c.h.b16 %v498
        %v626 = vunpack.c.l.b16 %v499
        %v627 = vunpack.c.h.b16 %v499
        %v628 = vpack.c.b16 %v566, %v564
        %v629 = vpack.c.b16 %v567, %v565
        %v630 = vpack.c.b16 %v570, %v568
        %v631 = vpack.c.b16 %v571, %v569
        %v632 = vpack.c.b16 %v574, %v572
        %v633 = vpack.c.b16 %v575, %v573
        %v634 = vpack.c.b16 %v578, %v576
        %v635 = vpack.c.b16 %v579, %v577
        %v636 = vpack.c.b16 %v582, %v580
        %v637 = vpack.c.b16 %v583, %v581
        %v638 = vpack.c.b16 %v586, %v584
        %v639 = vpack.c.b16 %v587, %v585
        %v640 = vpack.c.b16 %v590, %v588
        %v641 = vpack.c.b16 %v591, %v589
        %v642 = vpack.c.b16 %v594, %v592
        %v643 = vpack.c.b16 %v595, %v593
        %v644 = vpack.c.b16 %v598, %v596
        %v645 = vpack.c.b16 %v599, %v597
        %v646 = vpack.c.b16 %v602, %v600
        %v647 = vpack.c.b16 %v603, %v601
        %v648 = vpack.c.b16 %v606, %v604
        %v649 = vpack.c.b16 %v607, %v605
        %v650 = vpack.c.b16 %v610, %v608
        %v651 = vpack.c.b16 %v611, %v609
        %v652 = vpack.c.b16 %v614, %v612
        %v653 = vpack.c.b16 %v615, %v613
        %v654 = vpack.c.b16 %v618, %v616
        %v655 = vpack.c.b16 %v619, %v617
        %v656 = vpack.c.b16 %v622, %v620
        %v657 = vpack.c.b16 %v623, %v621
        %v658 = vpack.c.b16 %v626, %v624
        %v659 = vpack.c.b16 %v627, %v625
        %v724 = vunpack.c.l.b16 %v500
        %v725 = vunpack.c.l.b16 %v501
        %v726 = vunpack.c.l.b16 %v502
        %v727 = vunpack.c.l.b16 %v503
        %v728 = vunpack.c.l.b16 %v504
        %v729 = vunpack.c.l.b16 %v505
        %v730 = vunpack.c.l.b16 %v506
        %v731 = vunpack.c.l.b16 %v507
        %v732 = vunpack.c.l.b16 %v508
        %v733 = vunpack.c.l.b16 %v509
        %v734 = vunpack.c.l.b16 %v510
        %v735 = vunpack.c.l.b16 %v511
        %v736 = vunpack.c.l.b16 %v512
        %v737 = vunpack.c.l.b16 %v513
        %v738 = vunpack.c.l.b16 %v514
        %v739 = vunpack.c.l.b16 %v515
        %v740 = vunpack.c.l.b16 %v516
        %v741 = vunpack.c.l.b16 %v517
        %v742 = vunpack.c.l.b16 %v518
        %v743 = vunpack.c.l.b16 %v519
        %v744 = vunpack.c.l.b16 %v520
        %v745 = vunpack.c.l.b16 %v521
        %v746 = vunpack.c.l.b16 %v522
        %v747 = vunpack.c.l.b16 %v523
        %v748 = vunpack.c.l.b16 %v524
        %v749 = vunpack.c.l.b16 %v525
        %v750 = vunpack.c.l.b16 %v526
        %v751 = vunpack.c.l.b16 %v527
        %v752 = vunpack.c.l.b16 %v528
        %v753 = vunpack.c.l.b16 %v529
        %v754 = vunpack.c.l.b16 %v530
        %v755 = vunpack.c.l.b16 %v531
        %v756 = vpack.c.b16 %v725, %v724
        %v757 = vpack.c.b16 %v727, %v726
        %v758 = vpack.c.b16 %v729, %v728
        %v759 = vpack.c.b16 %v731, %v730
        %v760 = vpack.c.b16 %v733, %v732
        %v761 = vpack.c.b16 %v735, %v734
        %v762 = vpack.c.b16 %v737, %v736
        %v763 = vpack.c.b16 %v739, %v738
        %v764 = vpack.c.b16 %v741, %v740
        %v765 = vpack.c.b16 %v743, %v742
        %v766 = vpack.c.b16 %v745, %v744
        %v767 = vpack.c.b16 %v747, %v746
        %v768 = vpack.c.b16 %v749, %v748
        %v769 = vpack.c.b16 %v751, %v750
        %v770 = vpack.c.b16 %v753, %v752
        %v771 = vpack.c.b16 %v755, %v754
        %788 = vmatpush.bf16.msra.mxu0 %v763
        %789 = vmatpush.bf16.msra.mxu0 %v762
        %790 = vmatpush.bf16.msra.mxu0 %v761
        %791 = vmatpush.bf16.msra.mxu0 %v760
        %792 = vmatpush.bf16.msra.mxu0 %v759
        %793 = vmatpush.bf16.msra.mxu0 %v758
        %794 = vmatpush.bf16.msra.mxu0 %v757
        %795 = vmatpush.bf16.msra.mxu0 %v756
        %796 = vmatmul.bf16.gmra.mxu0 %v628
        %v797 = vpop.f32.mrf.mxu0
        %v798 = vadd.f32 0.0, %v797
        %v799 = vpop.f32.mrf.mxu0
        %v800 = vadd.f32 0.0, %v799
        %801 = vmatmul.bf16.gmra.mxu0 %v630
        %v802 = vpop.f32.mrf.mxu0
        %v803 = vadd.f32 0.0, %v802
        %v804 = vpop.f32.mrf.mxu0
        %v805 = vadd.f32 0.0, %v804
        %806 = vmatmul.bf16.gmra.mxu0 %v632
        %v807 = vpop.f32.mrf.mxu0
        %v808 = vadd.f32 0.0, %v807
        %v809 = vpop.f32.mrf.mxu0
        %v810 = vadd.f32 0.0, %v809
        %811 = vmatmul.bf16.gmra.mxu0 %v634
        %v812 = vpop.f32.mrf.mxu0
        %v813 = vadd.f32 0.0, %v812
        %v814 = vpop.f32.mrf.mxu0
        %v815 = vadd.f32 0.0, %v814
        %816 = vmatmul.bf16.gmra.mxu0 %v636
        %v817 = vpop.f32.mrf.mxu0
        %v818 = vadd.f32 0.0, %v817
        %v819 = vpop.f32.mrf.mxu0
        %v820 = vadd.f32 0.0, %v819
        %821 = vmatmul.bf16.gmra.mxu0 %v638
        %v822 = vpop.f32.mrf.mxu0
        %v823 = vadd.f32 0.0, %v822
        %v824 = vpop.f32.mrf.mxu0
        %v825 = vadd.f32 0.0, %v824
        %826 = vmatmul.bf16.gmra.mxu0 %v640
        %v827 = vpop.f32.mrf.mxu0
        %v828 = vadd.f32 0.0, %v827
        %v829 = vpop.f32.mrf.mxu0
        %v830 = vadd.f32 0.0, %v829
        %831 = vmatmul.bf16.gmra.mxu0 %v642
        %v832 = vpop.f32.mrf.mxu0
        %v833 = vadd.f32 0.0, %v832
        %v834 = vpop.f32.mrf.mxu0
        %v835 = vadd.f32 0.0, %v834
        %836 = vmatmul.bf16.gmra.mxu0 %v644
        %v837 = vpop.f32.mrf.mxu0
        %v838 = vadd.f32 0.0, %v837
        %v839 = vpop.f32.mrf.mxu0
        %v840 = vadd.f32 0.0, %v839
        %841 = vmatmul.bf16.gmra.mxu0 %v646
        %v842 = vpop.f32.mrf.mxu0
        %v843 = vadd.f32 0.0, %v842
        %v844 = vpop.f32.mrf.mxu0
        %v845 = vadd.f32 0.0, %v844
        %846 = vmatmul.bf16.gmra.mxu0 %v648
        %v847 = vpop.f32.mrf.mxu0
        %v848 = vadd.f32 0.0, %v847
        %v849 = vpop.f32.mrf.mxu0
        %v850 = vadd.f32 0.0, %v849
        %851 = vmatmul.bf16.gmra.mxu0 %v650
        %v852 = vpop.f32.mrf.mxu0
        %v853 = vadd.f32 0.0, %v852
        %v854 = vpop.f32.mrf.mxu0
        %v855 = vadd.f32 0.0, %v854
        %856 = vmatmul.bf16.gmra.mxu0 %v652
        %v857 = vpop.f32.mrf.mxu0
        %v858 = vadd.f32 0.0, %v857
        %v859 = vpop.f32.mrf.mxu0
        %v860 = vadd.f32 0.0, %v859
        %861 = vmatmul.bf16.gmra.mxu0 %v654
        %v862 = vpop.f32.mrf.mxu0
        %v863 = vadd.f32 0.0, %v862
        %v864 = vpop.f32.mrf.mxu0
        %v865 = vadd.f32 0.0, %v864
        %866 = vmatmul.bf16.gmra.mxu0 %v656
        %v867 = vpop.f32.mrf.mxu0
        %v868 = vadd.f32 0.0, %v867
        %v869 = vpop.f32.mrf.mxu0
        %v870 = vadd.f32 0.0, %v869
        %871 = vmatmul.bf16.gmra.mxu0 %v658
        %v872 = vpop.f32.mrf.mxu0
        %v873 = vadd.f32 0.0, %v872
        %v874 = vpop.f32.mrf.mxu0
        %v875 = vadd.f32 0.0, %v874
        %876 = vdwg.mxu0
        %877 = vmatpush.bf16.msra.mxu0 %v771
        %878 = vmatpush.bf16.msra.mxu0 %v770
        %879 = vmatpush.bf16.msra.mxu0 %v769
        %880 = vmatpush.bf16.msra.mxu0 %v768
        %881 = vmatpush.bf16.msra.mxu0 %v767
        %882 = vmatpush.bf16.msra.mxu0 %v766
        %883 = vmatpush.bf16.msra.mxu0 %v765
        %884 = vmatpush.bf16.msra.mxu0 %v764
        %885 = vmatmul.bf16.gmra.mxu0 %v629
        %v886 = vpop.f32.mrf.mxu0
        %v887 = vadd.f32 %v798, %v886
        %v888 = vpop.f32.mrf.mxu0
        %v889 = vadd.f32 %v800, %v888
        %890 = vmatmul.bf16.gmra.mxu0 %v631
        %v891 = vpop.f32.mrf.mxu0
        %v892 = vadd.f32 %v803, %v891
        %v893 = vpop.f32.mrf.mxu0
        %v894 = vadd.f32 %v805, %v893
        %895 = vmatmul.bf16.gmra.mxu0 %v633
        %v896 = vpop.f32.mrf.mxu0
        %v897 = vadd.f32 %v808, %v896
        %v898 = vpop.f32.mrf.mxu0
        %v899 = vadd.f32 %v810, %v898
        %900 = vmatmul.bf16.gmra.mxu0 %v635
        %v901 = vpop.f32.mrf.mxu0
        %v902 = vadd.f32 %v813, %v901
        %v903 = vpop.f32.mrf.mxu0
        %v904 = vadd.f32 %v815, %v903
        %905 = vmatmul.bf16.gmra.mxu0 %v637
        %v906 = vpop.f32.mrf.mxu0
        %v907 = vadd.f32 %v818, %v906
        %v908 = vpop.f32.mrf.mxu0
        %v909 = vadd.f32 %v820, %v908
        %910 = vmatmul.bf16.gmra.mxu0 %v639
        %v911 = vpop.f32.mrf.mxu0
        %v912 = vadd.f32 %v823, %v911
        %v913 = vpop.f32.mrf.mxu0
        %v914 = vadd.f32 %v825, %v913
        %915 = vmatmul.bf16.gmra.mxu0 %v641
        %v916 = vpop.f32.mrf.mxu0
        %v917 = vadd.f32 %v828, %v916
        %v918 = vpop.f32.mrf.mxu0
        %v919 = vadd.f32 %v830, %v918
        %920 = vmatmul.bf16.gmra.mxu0 %v643
        %v921 = vpop.f32.mrf.mxu0
        %v922 = vadd.f32 %v833, %v921
        %v923 = vpop.f32.mrf.mxu0
        %v924 = vadd.f32 %v835, %v923
        %925 = vmatmul.bf16.gmra.mxu0 %v645
        %v926 = vpop.f32.mrf.mxu0
        %v927 = vadd.f32 %v838, %v926
        %v928 = vpop.f32.mrf.mxu0
        %v929 = vadd.f32 %v840, %v928
        %930 = vmatmul.bf16.gmra.mxu0 %v647
        %v931 = vpop.f32.mrf.mxu0
        %v932 = vadd.f32 %v843, %v931
        %v933 = vpop.f32.mrf.mxu0
        %v934 = vadd.f32 %v845, %v933
        %935 = vmatmul.bf16.gmra.mxu0 %v649
        %v936 = vpop.f32.mrf.mxu0
        %v937 = vadd.f32 %v848, %v936
        %v938 = vpop.f32.mrf.mxu0
        %v939 = vadd.f32 %v850, %v938
        %940 = vmatmul.bf16.gmra.mxu0 %v651
        %v941 = vpop.f32.mrf.mxu0
        %v942 = vadd.f32 %v853, %v941
        %v943 = vpop.f32.mrf.mxu0
        %v944 = vadd.f32 %v855, %v943
        %945 = vmatmul.bf16.gmra.mxu0 %v653
        %v946 = vpop.f32.mrf.mxu0
        %v947 = vadd.f32 %v858, %v946
        %v948 = vpop.f32.mrf.mxu0
        %v949 = vadd.f32 %v860, %v948
        %950 = vmatmul.bf16.gmra.mxu0 %v655
        %v951 = vpop.f32.mrf.mxu0
        %v952 = vadd.f32 %v863, %v951
        %v953 = vpop.f32.mrf.mxu0
        %v954 = vadd.f32 %v865, %v953
        %955 = vmatmul.bf16.gmra.mxu0 %v657
        %v956 = vpop.f32.mrf.mxu0
        %v957 = vadd.f32 %v868, %v956
        %v958 = vpop.f32.mrf.mxu0
        %v959 = vadd.f32 %v870, %v958
        %960 = vmatmul.bf16.gmra.mxu0 %v659
        %v961 = vpop.f32.mrf.mxu0
        %v962 = vadd.f32 %v873, %v961
        %v963 = vpop.f32.mrf.mxu0
        %v964 = vadd.f32 %v875, %v963
        %965 = vdwg.mxu0
        %v966 = vadd.f32 %v436, %v887
        %v967 = vadd.f32 %v437, %v889
        %v968 = vadd.f32 %v438, %v892
        %v969 = vadd.f32 %v439, %v894
        %v970 = vadd.f32 %v440, %v897
        %v971 = vadd.f32 %v441, %v899
        %v972 = vadd.f32 %v442, %v902
        %v973 = vadd.f32 %v443, %v904
        %v974 = vadd.f32 %v444, %v907
        %v975 = vadd.f32 %v445, %v909
        %v976 = vadd.f32 %v446, %v912
        %v977 = vadd.f32 %v447, %v914
        %v978 = vadd.f32 %v448, %v917
        %v979 = vadd.f32 %v449, %v919
        %v980 = vadd.f32 %v450, %v922
        %v981 = vadd.f32 %v451, %v924
        %v982 = vadd.f32 %v452, %v927
        %v983 = vadd.f32 %v453, %v929
        %v984 = vadd.f32 %v454, %v932
        %v985 = vadd.f32 %v455, %v934
        %v986 = vadd.f32 %v456, %v937
        %v987 = vadd.f32 %v457, %v939
        %v988 = vadd.f32 %v458, %v942
        %v989 = vadd.f32 %v459, %v944
        %v990 = vadd.f32 %v460, %v947
        %v991 = vadd.f32 %v461, %v949
        %v992 = vadd.f32 %v462, %v952
        %v993 = vadd.f32 %v463, %v954
        %v994 = vadd.f32 %v464, %v957
        %v995 = vadd.f32 %v465, %v959
        %v996 = vadd.f32 %v466, %v962
        %v997 = vadd.f32 %v467, %v964
        %998 = vst [vmem:[#allocation2] sm:$0xff] %v966
        %999 = vst [vmem:[#allocation2 + $0x8] sm:$0xff] %v967
        %1000 = vst [vmem:[#allocation2 + $0x10] sm:$0xff] %v968
        %1001 = vst [vmem:[#allocation2 + $0x18] sm:$0xff] %v969
        %1002 = vst [vmem:[#allocation2 + $0x20] sm:$0xff] %v970
        %1003 = vst [vmem:[#allocation2 + $0x28] sm:$0xff] %v971
        %1004 = vst [vmem:[#allocation2 + $0x30] sm:$0xff] %v972
        %1005 = vst [vmem:[#allocation2 + $0x38] sm:$0xff] %v973
        %1006 = vst [vmem:[#allocation2 + $0x40] sm:$0xff] %v974
        %1007 = vst [vmem:[#allocation2 + $0x48] sm:$0xff] %v975
        %1008 = vst [vmem:[#allocation2 + $0x50] sm:$0xff] %v976
        %1009 = vst [vmem:[#allocation2 + $0x58] sm:$0xff] %v977
        %1010 = vst [vmem:[#allocation2 + $0x60] sm:$0xff] %v978
        %1011 = vst [vmem:[#allocation2 + $0x68] sm:$0xff] %v979
        %1012 = vst [vmem:[#allocation2 + $0x70] sm:$0xff] %v980
        %1013 = vst [vmem:[#allocation2 + $0x78] sm:$0xff] %v981
        %1014 = vst [vmem:[#allocation2 + $0x80] sm:$0xff] %v982
        %1015 = vst [vmem:[#allocation2 + $0x88] sm:$0xff] %v983
        %1016 = vst [vmem:[#allocation2 + $0x90] sm:$0xff] %v984
        %1017 = vst [vmem:[#allocation2 + $0x98] sm:$0xff] %v985
        %1018 = vst [vmem:[#allocation2 + $0xa0] sm:$0xff] %v986
        %1019 = vst [vmem:[#allocation2 + $0xa8] sm:$0xff] %v987
        %1020 = vst [vmem:[#allocation2 + $0xb0] sm:$0xff] %v988
        %1021 = vst [vmem:[#allocation2 + $0xb8] sm:$0xff] %v989
        %1022 = vst [vmem:[#allocation2 + $0xc0] sm:$0xff] %v990
        %1023 = vst [vmem:[#allocation2 + $0xc8] sm:$0xff] %v991
        %1024 = vst [vmem:[#allocation2 + $0xd0] sm:$0xff] %v992
        %1025 = vst [vmem:[#allocation2 + $0xd8] sm:$0xff] %v993
        %1026 = vst [vmem:[#allocation2 + $0xe0] sm:$0xff] %v994
        %1027 = vst [vmem:[#allocation2 + $0xe8] sm:$0xff] %v995
        %1028 = vst [vmem:[#allocation2 + $0xf0] sm:$0xff] %v996
        %1029 = vst [vmem:[#allocation2 + $0xf8] sm:$0xff] %v997
        %p1030 = scmp.eq.s32.totalorder %s20, 1
        // Predicated region
        $region79: #{_gcn_forward.2} parent=69 // pred_check
          %p1031 = pneg %p1030
        $region80: #{_gcn_forward.2} parent=69 // pred_check_branch
          %1033 = sbr.rel (%p1031) target = $region82
        $region81: #{_gcn_forward.2} parent=69 // pred_region
          %v1034 = vld [vmem:[#allocation2] sm:$0xff]
          %v1035 = vld [vmem:[#allocation2 + $0x8] sm:$0xff]
          %v1036 = vld [vmem:[#allocation2 + $0x10] sm:$0xff]
          %v1037 = vld [vmem:[#allocation2 + $0x18] sm:$0xff]
          %v1038 = vld [vmem:[#allocation2 + $0x20] sm:$0xff]
          %v1039 = vld [vmem:[#allocation2 + $0x28] sm:$0xff]
          %v1040 = vld [vmem:[#allocation2 + $0x30] sm:$0xff]
          %v1041 = vld [vmem:[#allocation2 + $0x38] sm:$0xff]
          %v1042 = vld [vmem:[#allocation2 + $0x40] sm:$0xff]
          %v1043 = vld [vmem:[#allocation2 + $0x48] sm:$0xff]
          %v1044 = vld [vmem:[#allocation2 + $0x50] sm:$0xff]
          %v1045 = vld [vmem:[#allocation2 + $0x58] sm:$0xff]
          %v1046 = vld [vmem:[#allocation2 + $0x60] sm:$0xff]
          %v1047 = vld [vmem:[#allocation2 + $0x68] sm:$0xff]
          %v1048 = vld [vmem:[#allocation2 + $0x70] sm:$0xff]
          %v1049 = vld [vmem:[#allocation2 + $0x78] sm:$0xff]
          %v1050 = vld [vmem:[#allocation2 + $0x80] sm:$0xff]
          %v1051 = vld [vmem:[#allocation2 + $0x88] sm:$0xff]
          %v1052 = vld [vmem:[#allocation2 + $0x90] sm:$0xff]
          %v1053 = vld [vmem:[#allocation2 + $0x98] sm:$0xff]
          %v1054 = vld [vmem:[#allocation2 + $0xa0] sm:$0xff]
          %v1055 = vld [vmem:[#allocation2 + $0xa8] sm:$0xff]
          %v1056 = vld [vmem:[#allocation2 + $0xb0] sm:$0xff]
          %v1057 = vld [vmem:[#allocation2 + $0xb8] sm:$0xff]
          %v1058 = vld [vmem:[#allocation2 + $0xc0] sm:$0xff]
          %v1059 = vld [vmem:[#allocation2 + $0xc8] sm:$0xff]
          %v1060 = vld [vmem:[#allocation2 + $0xd0] sm:$0xff]
          %v1061 = vld [vmem:[#allocation2 + $0xd8] sm:$0xff]
          %v1062 = vld [vmem:[#allocation2 + $0xe0] sm:$0xff]
          %v1063 = vld [vmem:[#allocation2 + $0xe8] sm:$0xff]
          %v1064 = vld [vmem:[#allocation2 + $0xf0] sm:$0xff]
          %v1065 = vld [vmem:[#allocation2 + $0xf8] sm:$0xff]
          %v1066 = vpack.c.bf16 %v1035, %v1034
          %v1067 = vpack.c.bf16 %v1037, %v1036
          %v1068 = vpack.c.bf16 %v1039, %v1038
          %v1069 = vpack.c.bf16 %v1041, %v1040
          %v1070 = vpack.c.bf16 %v1043, %v1042
          %v1071 = vpack.c.bf16 %v1045, %v1044
          %v1072 = vpack.c.bf16 %v1047, %v1046
          %v1073 = vpack.c.bf16 %v1049, %v1048
          %v1074 = vpack.c.bf16 %v1051, %v1050
          %v1075 = vpack.c.bf16 %v1053, %v1052
          %v1076 = vpack.c.bf16 %v1055, %v1054
          %v1077 = vpack.c.bf16 %v1057, %v1056
          %v1078 = vpack.c.bf16 %v1059, %v1058
          %v1079 = vpack.c.bf16 %v1061, %v1060
          %v1080 = vpack.c.bf16 %v1063, %v1062
          %v1081 = vpack.c.bf16 %v1065, %v1064
          %v1082 = vld [vmem:[%s2] sm:$0xf]
          %v1083 = vld [vmem:[%s2 + $0x4] sm:$0xf]
          %v1084 = vld [vmem:[%s2 + $0x8] sm:$0xf]
          %v1085 = vld [vmem:[%s2 + $0xc] sm:$0xf]
          %v1086 = vld [vmem:[%s2 + $0x10] sm:$0xf]
          %v1087 = vld [vmem:[%s2 + $0x14] sm:$0xf]
          %v1088 = vld [vmem:[%s2 + $0x18] sm:$0xf]
          %v1089 = vld [vmem:[%s2 + $0x1c] sm:$0xf]
          %v1090 = vld [vmem:[%s2 + $0x20] sm:$0xf]
          %v1091 = vld [vmem:[%s2 + $0x24] sm:$0xf]
          %v1092 = vld [vmem:[%s2 + $0x28] sm:$0xf]
          %v1093 = vld [vmem:[%s2 + $0x2c] sm:$0xf]
          %v1094 = vld [vmem:[%s2 + $0x30] sm:$0xf]
          %v1095 = vld [vmem:[%s2 + $0x34] sm:$0xf]
          %v1096 = vld [vmem:[%s2 + $0x38] sm:$0xf]
          %v1097 = vld [vmem:[%s2 + $0x3c] sm:$0xf]
          %v1098 = vld [vmem:[%s3] sm:$0x1]
          %v1100 = vperm.slane %v1098, 0
          %v1118 = vunpack.c.l.b16 %v1082
          %v1119 = vunpack.c.l.b16 %v1083
          %v1120 = vunpack.c.l.b16 %v1084
          %v1121 = vunpack.c.l.b16 %v1085
          %v1122 = vunpack.c.l.b16 %v1086
          %v1123 = vunpack.c.l.b16 %v1087
          %v1124 = vunpack.c.l.b16 %v1088
          %v1125 = vunpack.c.l.b16 %v1089
          %v1126 = vunpack.c.l.b16 %v1090
          %v1127 = vunpack.c.l.b16 %v1091
          %v1128 = vunpack.c.l.b16 %v1092
          %v1129 = vunpack.c.l.b16 %v1093
          %v1130 = vunpack.c.l.b16 %v1094
          %v1131 = vunpack.c.l.b16 %v1095
          %v1132 = vunpack.c.l.b16 %v1096
          %v1133 = vunpack.c.l.b16 %v1097
          %v1134 = vpack.c.b16 %v1119, %v1118
          %v1135 = vpack.c.b16 %v1121, %v1120
          %v1136 = vpack.c.b16 %v1123, %v1122
          %v1137 = vpack.c.b16 %v1125, %v1124
          %v1138 = vpack.c.b16 %v1127, %v1126
          %v1139 = vpack.c.b16 %v1129, %v1128
          %v1140 = vpack.c.b16 %v1131, %v1130
          %v1141 = vpack.c.b16 %v1133, %v1132
          %1150 = vmatpush.bf16.msra.mxu0 %v1141
          %1151 = vmatpush.bf16.msra.mxu0 %v1140
          %1152 = vmatpush.bf16.msra.mxu0 %v1139
          %1153 = vmatpush.bf16.msra.mxu0 %v1138
          %1154 = vmatpush.bf16.msra.mxu0 %v1137
          %1155 = vmatpush.bf16.msra.mxu0 %v1136
          %1156 = vmatpush.bf16.msra.mxu0 %v1135
          %1157 = vmatpush.bf16.msra.mxu0 %v1134
          %1158 = vmatmul.bf16.gmra.mxu0 %v1066
          %v1159 = vpop.f32.mrf.mxu0
          %v1160 = vadd.f32 %v1100, %v1159
          %v1161 = vpop.f32.mrf.mxu0
          %v1162 = vadd.f32 %v1100, %v1161
          %1163 = vmatmul.bf16.gmra.mxu0 %v1067
          %v1164 = vpop.f32.mrf.mxu0
          %v1165 = vadd.f32 %v1100, %v1164
          %v1166 = vpop.f32.mrf.mxu0
          %v1167 = vadd.f32 %v1100, %v1166
          %1168 = vmatmul.bf16.gmra.mxu0 %v1068
          %v1169 = vpop.f32.mrf.mxu0
          %v1170 = vadd.f32 %v1100, %v1169
          %v1171 = vpop.f32.mrf.mxu0
          %v1172 = vadd.f32 %v1100, %v1171
          %1173 = vmatmul.bf16.gmra.mxu0 %v1069
          %v1174 = vpop.f32.mrf.mxu0
          %v1175 = vadd.f32 %v1100, %v1174
          %v1176 = vpop.f32.mrf.mxu0
          %v1177 = vadd.f32 %v1100, %v1176
          %1178 = vmatmul.bf16.gmra.mxu0 %v1070
          %v1179 = vpop.f32.mrf.mxu0
          %v1180 = vadd.f32 %v1100, %v1179
          %v1181 = vpop.f32.mrf.mxu0
          %v1182 = vadd.f32 %v1100, %v1181
          %1183 = vmatmul.bf16.gmra.mxu0 %v1071
          %v1184 = vpop.f32.mrf.mxu0
          %v1185 = vadd.f32 %v1100, %v1184
          %v1186 = vpop.f32.mrf.mxu0
          %v1187 = vadd.f32 %v1100, %v1186
          %1188 = vmatmul.bf16.gmra.mxu0 %v1072
          %v1189 = vpop.f32.mrf.mxu0
          %v1190 = vadd.f32 %v1100, %v1189
          %v1191 = vpop.f32.mrf.mxu0
          %v1192 = vadd.f32 %v1100, %v1191
          %1193 = vmatmul.bf16.gmra.mxu0 %v1073
          %v1194 = vpop.f32.mrf.mxu0
          %v1195 = vadd.f32 %v1100, %v1194
          %v1196 = vpop.f32.mrf.mxu0
          %v1197 = vadd.f32 %v1100, %v1196
          %1198 = vmatmul.bf16.gmra.mxu0 %v1074
          %v1199 = vpop.f32.mrf.mxu0
          %v1200 = vadd.f32 %v1100, %v1199
          %v1201 = vpop.f32.mrf.mxu0
          %v1202 = vadd.f32 %v1100, %v1201
          %1203 = vmatmul.bf16.gmra.mxu0 %v1075
          %v1204 = vpop.f32.mrf.mxu0
          %v1205 = vadd.f32 %v1100, %v1204
          %v1206 = vpop.f32.mrf.mxu0
          %v1207 = vadd.f32 %v1100, %v1206
          %1208 = vmatmul.bf16.gmra.mxu0 %v1076
          %v1209 = vpop.f32.mrf.mxu0
          %v1210 = vadd.f32 %v1100, %v1209
          %v1211 = vpop.f32.mrf.mxu0
          %v1212 = vadd.f32 %v1100, %v1211
          %1213 = vmatmul.bf16.gmra.mxu0 %v1077
          %v1214 = vpop.f32.mrf.mxu0
          %v1215 = vadd.f32 %v1100, %v1214
          %v1216 = vpop.f32.mrf.mxu0
          %v1217 = vadd.f32 %v1100, %v1216
          %1218 = vmatmul.bf16.gmra.mxu0 %v1078
          %v1219 = vpop.f32.mrf.mxu0
          %v1220 = vadd.f32 %v1100, %v1219
          %v1221 = vpop.f32.mrf.mxu0
          %v1222 = vadd.f32 %v1100, %v1221
          %1223 = vmatmul.bf16.gmra.mxu0 %v1079
          %v1224 = vpop.f32.mrf.mxu0
          %v1225 = vadd.f32 %v1100, %v1224
          %v1226 = vpop.f32.mrf.mxu0
          %v1227 = vadd.f32 %v1100, %v1226
          %1228 = vmatmul.bf16.gmra.mxu0 %v1080
          %v1229 = vpop.f32.mrf.mxu0
          %v1230 = vadd.f32 %v1100, %v1229
          %v1231 = vpop.f32.mrf.mxu0
          %v1232 = vadd.f32 %v1100, %v1231
          %1233 = vmatmul.bf16.gmra.mxu0 %v1081
          %v1234 = vpop.f32.mrf.mxu0
          %v1235 = vadd.f32 %v1100, %v1234
          %v1236 = vpop.f32.mrf.mxu0
          %v1237 = vadd.f32 %v1100, %v1236
          %1238 = vdwg.mxu0
          %1239 = vst [vmem:[%s398] sm:$0xff] %v1160
          %1240 = vst [vmem:[%s398 + $0x8] sm:$0xff] %v1162
          %1241 = vst [vmem:[%s398 + $0x10] sm:$0xff] %v1165
          %1242 = vst [vmem:[%s398 + $0x18] sm:$0xff] %v1167
          %1243 = vst [vmem:[%s398 + $0x20] sm:$0xff] %v1170
          %1244 = vst [vmem:[%s398 + $0x28] sm:$0xff] %v1172
          %1245 = vst [vmem:[%s398 + $0x30] sm:$0xff] %v1175
          %1246 = vst [vmem:[%s398 + $0x38] sm:$0xff] %v1177
          %1247 = vst [vmem:[%s398 + $0x40] sm:$0xff] %v1180
          %1248 = vst [vmem:[%s398 + $0x48] sm:$0xff] %v1182
          %1249 = vst [vmem:[%s398 + $0x50] sm:$0xff] %v1185
          %1250 = vst [vmem:[%s398 + $0x58] sm:$0xff] %v1187
          %1251 = vst [vmem:[%s398 + $0x60] sm:$0xff] %v1190
          %1252 = vst [vmem:[%s398 + $0x68] sm:$0xff] %v1192
          %1253 = vst [vmem:[%s398 + $0x70] sm:$0xff] %v1195
          %1254 = vst [vmem:[%s398 + $0x78] sm:$0xff] %v1197
          %1255 = vst [vmem:[%s398 + $0x80] sm:$0xff] %v1200
          %1256 = vst [vmem:[%s398 + $0x88] sm:$0xff] %v1202
          %1257 = vst [vmem:[%s398 + $0x90] sm:$0xff] %v1205
          %1258 = vst [vmem:[%s398 + $0x98] sm:$0xff] %v1207
          %1259 = vst [vmem:[%s398 + $0xa0] sm:$0xff] %v1210
          %1260 = vst [vmem:[%s398 + $0xa8] sm:$0xff] %v1212
          %1261 = vst [vmem:[%s398 + $0xb0] sm:$0xff] %v1215
          %1262 = vst [vmem:[%s398 + $0xb8] sm:$0xff] %v1217
          %1263 = vst [vmem:[%s398 + $0xc0] sm:$0xff] %v1220
          %1264 = vst [vmem:[%s398 + $0xc8] sm:$0xff] %v1222
          %1265 = vst [vmem:[%s398 + $0xd0] sm:$0xff] %v1225
          %1266 = vst [vmem:[%s398 + $0xd8] sm:$0xff] %v1227
          %1267 = vst [vmem:[%s398 + $0xe0] sm:$0xff] %v1230
          %1268 = vst [vmem:[%s398 + $0xe8] sm:$0xff] %v1232
          %1269 = vst [vmem:[%s398 + $0xf0] sm:$0xff] %v1235
          %1270 = vst [vmem:[%s398 + $0xf8] sm:$0xff] %v1237
        $region82: #{_gcn_forward.2} parent=69 // pred_fallthru
          _
        %s1271 = smul.u32 32, %s19
        %p1272 = scmp.lt.s32.totalorder %s1271, 63
        %s1273 = scalar_select %p1272, %s1271, 63
        %s1274 = smul.addr %s1273, 8
        %s1275 = scalar_lea.vmem %s4, %s1274
        // Predicated region
        $region83: #{_gcn_forward.2} parent=69 // pred_check
          %p1276 = pneg %p141
        $region84: #{_gcn_forward.2} parent=69 // pred_check_branch
          %1278 = sbr.rel (%p1276) target = $region86
        $region85: #{_gcn_forward.2} parent=69 // pred_region
          %s1279 = smul.u32 32, %s19
        $region86: #{_gcn_forward.2} parent=69 // pred_fallthru
          _
      $region70: #{_gcn_forward.2} parent=5 // pred_fallthru
        _
      %p1280 = scmp.le.s32.totalorder 2, %s10
      // Predicated region
      $region87: #{_gcn_forward.2} parent=5 // pred_check
        %p1281 = pneg %p1280
      $region88: #{_gcn_forward.2} parent=5 // pred_check_branch
        %1283 = sbr.rel (%p1281) target = $region90
      $region89: #{_gcn_forward.2} parent=5 // pred_region
        %s1284 = ssub.s32 %s10, 2
        // Predicated region
        $region91: #{_gcn_forward.2} parent=89 // pred_check
          %p1285 = pneg %p147
        $region92: #{_gcn_forward.2} parent=89 // pred_check_branch
          %1287 = sbr.rel (%p1285) target = $region94
        $region93: #{_gcn_forward.2} parent=89 // pred_region
          %s1288 = smul.u32 32, %s21
          %p1289 = scmp.lt.s32.totalorder %s1288, 63
          %s1290 = scalar_select %p1289, %s1288, 63
          %s1291 = smul.addr %s1290, 8
          %s1292 = scalar_lea.vmem %s4, %s1291
        $region94: #{_gcn_forward.2} parent=89 // pred_fallthru
          _
      $region90: #{_gcn_forward.2} parent=5 // pred_fallthru
        _
    $region6: #{_gcn_forward.2} parent=1 // loop_footer
      %s14 = sadd.s32 1, %s10
    $region7: #{_gcn_forward.2} parent=1 // loop_footer_branch
      %9 = sbr.rel target = $region3
    $region8: #{_gcn_forward.2} parent=1 // loop_exit
      _

</llo_original>
